<compile_context>
chip_gen: v6e
topology: v6e:2x2x1
jax: 0.10.0
libtpu: 0.0.40
codegen_flags: <defaults>
</compile_context>

<pallas_src>
import functools

import jax
import jax.numpy as jnp
from jax.experimental import pallas as pl
from jax.experimental.pallas import tpu as pltpu

LANE = 128


def _round_up(x, m):
    return (x + m - 1) // m * m


def _gcn_kernel(x_ref, adj_ref,
                w1_ref, b1_ref,
                w2_ref, b2_ref,
                w3_ref, b3_ref,
                w4_ref, b4_ref,
                o_ref, *, slope):
    """One graph per grid step.

    x_ref [N, in], adj_ref [N, N], weights: compute dtype (bf16).
    biases: f32.  o_ref: [N, OUT_PAD] f32 (lane-dense, padded output).
    """
    cdt = x_ref.dtype

    def leaky(h):                      # f32 elementwise on the VPU
        return jnp.where(h >= 0, h, slope * h)

    x = x_ref[...]
    adj = adj_ref[...]

    # gc1: h1 = leaky(adj @ (x @ W1) + b1)
    # Keep this contraction order: shrink the lane dim BEFORE the NxN matmul.
    s1 = jnp.dot(x, w1_ref[...], preferred_element_type=jnp.float32).astype(cdt)
    h1 = leaky(jnp.dot(adj, s1, preferred_element_type=jnp.float32) + b1_ref[...])
    # F.dropout(..., training=False) -> identity.
    # TODO(synk): training-mode dropout (pltpu.prng_seed/prng_random_bits) not implemented.

    # gc2: h2 = leaky(adj @ (h1 @ W2) + b2)
    s2 = jnp.dot(h1.astype(cdt), w2_ref[...],
                 preferred_element_type=jnp.float32).astype(cdt)
    h2 = leaky(jnp.dot(adj, s2, preferred_element_type=jnp.float32) + b2_ref[...])

    # clf: Linear -> LeakyReLU -> Linear (last layer lane-padded to OUT_PAD)
    h3 = leaky(jnp.dot(h2.astype(cdt), w3_ref[...],
                       preferred_element_type=jnp.float32) + b3_ref[...])
    y = jnp.dot(h3.astype(cdt), w4_ref[...],
                preferred_element_type=jnp.float32) + b4_ref[...]

    o_ref[...] = y.astype(o_ref.dtype)


def gcn_forward(x, adj, params, slope, *, compute_dtype=jnp.bfloat16):
    """Batched GCN forward.

    x:   [B, N, in_dim]  (or [N, in_dim])  float32
    adj: [B, N, N]       (or [N, N])       float32 dense
         (torch.sparse.mm(adj, support) == adj @ support numerically)
    Returns [B, N, out_dim] (or [N, out_dim]) float32.
    """
    squeeze = (x.ndim == 2)
    if squeeze:
        x, adj = x[None], adj[None]
    B, N, in_dim = x.shape
    d2 = params["w1"].shape[1]
    d4 = params["w2"].shape[1]
    d8 = params["w3"].shape[1]
    out_dim = params["w4"].shape[1]
    out_pad = _round_up(max(out_dim, LANE), LANE)   # lane-dense output store

    # bf16 inputs / f32 accumulation: cast large operands + weights, keep biases f32.
    xc = x.astype(compute_dtype)
    adjc = adj.astype(compute_dtype)
    w1 = params["w1"].astype(compute_dtype)
    w2 = params["w2"].astype(compute_dtype)
    w3 = params["w3"].astype(compute_dtype)
    w4 = jnp.zeros((d8, out_pad), compute_dtype).at[:, :out_dim].set(
        params["w4"].astype(compute_dtype))
    b1 = params["b1"].astype(jnp.float32)
    b2 = params["b2"].astype(jnp.float32)
    b3 = params["b3"].astype(jnp.float32)
    b4 = jnp.zeros((1, out_pad), jnp.float32).at[:, :out_dim].set(
        params["b4"].astype(jnp.float32))

    # Advisory cost estimate for the XLA scheduler.
    flops = 2 * B * (N * in_dim * d2 + N * N * d2 + N * d2 * d4 + N * N * d4
                     + N * d4 * d8 + N * d8 * out_pad)
    bytes_accessed = (
        xc.size * xc.dtype.itemsize + adjc.size * adjc.dtype.itemsize
        + sum(a.size * a.dtype.itemsize for a in (w1, b1, w2, b2, w3, b3, w4, b4))
        + B * N * out_pad * 4)

    resident = lambda b: (0, 0)          # weights/biases: same block every step
    per_graph = lambda s: pl.BlockSpec((None,) + s, lambda b: (b, 0, 0))

    out = pl.pallas_call(
        functools.partial(_gcn_kernel, slope=slope),
        out_shape=jax.ShapeDtypeStruct((B, N, out_pad), jnp.float32),
        grid_spec=pltpu.PrefetchScalarGridSpec(
            num_scalar_prefetch=0,
            grid=(B,),
            in_specs=[
                per_graph((N, in_dim)),                      # x   (per graph)
                per_graph((N, N)),                           # adj (per graph)
                pl.BlockSpec(w1.shape, resident), pl.BlockSpec(b1.shape, resident),
                pl.BlockSpec(w2.shape, resident), pl.BlockSpec(b2.shape, resident),
                pl.BlockSpec(w3.shape, resident), pl.BlockSpec(b3.shape, resident),
                pl.BlockSpec(w4.shape, resident), pl.BlockSpec(b4.shape, resident),
            ],
            out_specs=pl.BlockSpec((None, N, out_pad), lambda b: (b, 0, 0)),
        ),
        compiler_params=pltpu.CompilerParams(
            dimension_semantics=("parallel",),
            vmem_limit_bytes=32 * 1024 * 1024,
        ),
        cost_estimate=pl.CostEstimate(
            flops=flops, transcendentals=0, bytes_accessed=bytes_accessed),
    )(xc, adjc, w1, b1, w2, b2, w3, b3, w4, b4)

    y = out[..., :out_dim]               # drop lane padding in the wrapper
    return y[0] if squeeze else y


def xavier_normal(key, fan_in, fan_out):
    std = (2.0 / (fan_in + fan_out)) ** 0.5
    return std * jax.random.normal(key, (fan_in, fan_out), dtype=jnp.float32)


def init_params(key, in_dim, out_dim):
    d2, d4, d8 = in_dim // 2, in_dim // 4, in_dim // 8
    k1, k2, k3, k4 = jax.random.split(key, 4)
    # GraphConvolution weights are [in, out] in torch too; nn.Linear weights are
    # [out, in] but we store their transpose so the kernel only does x @ W.
    # Biases are [1, out] for lane-broadcast.
    return {
        "w1": xavier_normal(k1, in_dim, d2), "b1": jnp.zeros((1, d2), jnp.float32),
        "w2": xavier_normal(k2, d2, d4),     "b2": jnp.zeros((1, d4), jnp.float32),
        "w3": xavier_normal(k3, d4, d8),     "b3": jnp.zeros((1, d8), jnp.float32),
        "w4": xavier_normal(k4, d8, out_dim), "b4": jnp.zeros((1, out_dim), jnp.float32),
    }


def _ref_forward(x, adj, params, slope, compute_dtype=jnp.bfloat16):
    """Plain-JAX reference (single graph) with the same bf16/f32 policy."""
    def leaky(h):
        return jnp.where(h >= 0, h, slope * h)

    def mm(a, b):
        return jnp.dot(a.astype(compute_dtype), b.astype(compute_dtype),
                       preferred_element_type=jnp.float32)

    h1 = leaky(mm(adj, mm(x, params["w1"]).astype(compute_dtype)) + params["b1"])
    h2 = leaky(mm(adj, mm(h1, params["w2"]).astype(compute_dtype)) + params["b2"])
    h3 = leaky(mm(h2, params["w3"]) + params["b3"])
    return mm(h3, params["w4"]) + params["b4"]


if __name__ == "__main__":
    B = 2           # batch of graphs (amortizes launch/DMA over the grid)
    N = 32          # nodes per graph
    in_dim = 64     # hidden dims 32, 16, 8
    out_dim = 4
    slope = 0.2
    dropout = 0.5   # unused at inference

    key = jax.random.PRNGKey(0)
    kx, ka, kp = jax.random.split(key, 3)

    x = jax.random.normal(kx, (B, N, in_dim), dtype=jnp.float32)
    # Dense symmetric "adjacency" with self loops, row-normalized, per graph.
    a = (jax.random.uniform(ka, (B, N, N)) > 0.7).astype(jnp.float32)
    adj = a + jnp.swapaxes(a, -1, -2) + jnp.eye(N, dtype=jnp.float32)[None]
    adj = adj / jnp.sum(adj, axis=-1, keepdims=True)

    params = init_params(kp, in_dim, out_dim)

    y = gcn_forward(x, adj, params, slope)
    jax.block_until_ready(y)
    assert y.shape == (B, N, out_dim), y.shape

    # Reference check (same precision policy), vmapped over the batch.
    y_ref = jax.vmap(lambda xb, ab: _ref_forward(xb, ab, params, slope))(x, adj)
    assert jnp.allclose(y, y_ref, atol=2e-2, rtol=2e-2), (
        f"mismatch vs reference: max abs err {jnp.max(jnp.abs(y - y_ref))}")

    # Also exercise the unbatched (single-graph) path.
    y0 = gcn_forward(x[0], adj[0], params, slope)
    jax.block_until_ready(y0)
    assert y0.shape == (N, out_dim)
    assert jnp.allclose(y0, y_ref[0], atol=2e-2, rtol=2e-2)

    print("KERNEL_OK")
</pallas_src>

<mosaic_0001>
module attributes {stable_mosaic.version = 11 : i64} {
  func.func @_gcn_kernel(%arg0: i32, %arg1: memref<1x32x64xbf16, #tpu.memory_space<vmem>>, %arg2: memref<1x32x32xbf16, #tpu.memory_space<vmem>>, %arg3: memref<64x32xbf16, #tpu.memory_space<vmem>>, %arg4: memref<1x32xf32, #tpu.memory_space<vmem>>, %arg5: memref<32x16xbf16, #tpu.memory_space<vmem>>, %arg6: memref<1x16xf32, #tpu.memory_space<vmem>>, %arg7: memref<16x8xbf16, #tpu.memory_space<vmem>>, %arg8: memref<1x8xf32, #tpu.memory_space<vmem>>, %arg9: memref<8x128xbf16, #tpu.memory_space<vmem>>, %arg10: memref<1x128xf32, #tpu.memory_space<vmem>>, %arg11: memref<1x32x128xf32, #tpu.memory_space<vmem>>) attributes {dimension_semantics = [#tpu.dimension_semantics<parallel>], iteration_bounds = array<i64: 2>, scalar_prefetch = 0 : i64, scratch_operands = 0 : i64, tpu.core_type = #tpu.core_type<tc>, window_params = [{transform_indices = @transform_0, window_bounds = array<i64: 1, 32, 64>}, {transform_indices = @transform_1, window_bounds = array<i64: 1, 32, 32>}, {pipeline_mode = #tpu.pipeline_mode<synchronous>, transform_indices = @transform_2, window_bounds = array<i64: 64, 32>}, {pipeline_mode = #tpu.pipeline_mode<synchronous>, transform_indices = @transform_3, window_bounds = array<i64: 1, 32>}, {pipeline_mode = #tpu.pipeline_mode<synchronous>, transform_indices = @transform_4, window_bounds = array<i64: 32, 16>}, {pipeline_mode = #tpu.pipeline_mode<synchronous>, transform_indices = @transform_5, window_bounds = array<i64: 1, 16>}, {pipeline_mode = #tpu.pipeline_mode<synchronous>, transform_indices = @transform_6, window_bounds = array<i64: 16, 8>}, {pipeline_mode = #tpu.pipeline_mode<synchronous>, transform_indices = @transform_7, window_bounds = array<i64: 1, 8>}, {pipeline_mode = #tpu.pipeline_mode<synchronous>, transform_indices = @transform_8, window_bounds = array<i64: 8, 128>}, {pipeline_mode = #tpu.pipeline_mode<synchronous>, transform_indices = @transform_9, window_bounds = array<i64: 1, 128>}, {transform_indices = @transform_10, window_bounds = array<i64: 1, 32, 128>}]} {
    %c0 = arith.constant 0 : index
    %c0_0 = arith.constant 0 : index
    %c0_1 = arith.constant 0 : index
    %0 = vector.load %arg1[%c0, %c0_0, %c0_1] : memref<1x32x64xbf16, #tpu.memory_space<vmem>>, vector<1x32x64xbf16>
    %1 = vector.shape_cast %0 : vector<1x32x64xbf16> to vector<32x64xbf16>
    %c0_2 = arith.constant 0 : index
    %c0_3 = arith.constant 0 : index
    %c0_4 = arith.constant 0 : index
    %2 = vector.load %arg2[%c0_2, %c0_3, %c0_4] : memref<1x32x32xbf16, #tpu.memory_space<vmem>>, vector<1x32x32xbf16>
    %3 = vector.shape_cast %2 : vector<1x32x32xbf16> to vector<32x32xbf16>
    %c0_5 = arith.constant 0 : index
    %c0_6 = arith.constant 0 : index
    %4 = vector.load %arg3[%c0_5, %c0_6] : memref<64x32xbf16, #tpu.memory_space<vmem>>, vector<64x32xbf16>
    %cst = arith.constant dense<0.000000e+00> : vector<32x32xf32>
    %5 = tpu.matmul %1, %4, %cst {dimension_numbers = #tpu.dot_dimension_numbers<[1], [0], [0], [1], [0, 0, 1, 1], [], []>} : vector<32x64xbf16>, vector<64x32xbf16>, vector<32x32xf32> -> vector<32x32xf32>
    %6 = arith.truncf %5 : vector<32x32xf32> to vector<32x32xbf16>
    %cst_7 = arith.constant dense<0.000000e+00> : vector<32x32xf32>
    %7 = tpu.matmul %3, %6, %cst_7 {dimension_numbers = #tpu.dot_dimension_numbers<[1], [0], [0], [1], [0, 0, 1, 1], [], []>} : vector<32x32xbf16>, vector<32x32xbf16>, vector<32x32xf32> -> vector<32x32xf32>
    %c0_8 = arith.constant 0 : index
    %c0_9 = arith.constant 0 : index
    %8 = vector.load %arg4[%c0_8, %c0_9] : memref<1x32xf32, #tpu.memory_space<vmem>>, vector<1x32xf32>
    %9 = vector.broadcast %8 : vector<1x32xf32> to vector<32x32xf32>
    %10 = arith.addf %7, %9 : vector<32x32xf32>
    %cst_10 = arith.constant 0.000000e+00 : f32
    %11 = vector.broadcast %cst_10 : f32 to vector<32x32xf32>
    %12 = arith.cmpf oge, %10, %11 : vector<32x32xf32>
    %cst_11 = arith.constant 2.000000e-01 : f32
    %13 = vector.broadcast %cst_11 : f32 to vector<32x32xf32>
    %14 = arith.mulf %13, %10 : vector<32x32xf32>
    %15 = arith.select %12, %10, %14 : vector<32x32xi1>, vector<32x32xf32>
    %16 = arith.truncf %15 : vector<32x32xf32> to vector<32x32xbf16>
    %c0_12 = arith.constant 0 : index
    %c0_13 = arith.constant 0 : index
    %17 = vector.load %arg5[%c0_12, %c0_13] : memref<32x16xbf16, #tpu.memory_space<vmem>>, vector<32x16xbf16>
    %cst_14 = arith.constant dense<0.000000e+00> : vector<32x16xf32>
    %18 = tpu.matmul %16, %17, %cst_14 {dimension_numbers = #tpu.dot_dimension_numbers<[1], [0], [0], [1], [0, 0, 1, 1], [], []>} : vector<32x32xbf16>, vector<32x16xbf16>, vector<32x16xf32> -> vector<32x16xf32>
    %19 = arith.truncf %18 : vector<32x16xf32> to vector<32x16xbf16>
    %cst_15 = arith.constant dense<0.000000e+00> : vector<32x16xf32>
    %20 = tpu.matmul %3, %19, %cst_15 {dimension_numbers = #tpu.dot_dimension_numbers<[1], [0], [0], [1], [0, 0, 1, 1], [], []>} : vector<32x32xbf16>, vector<32x16xbf16>, vector<32x16xf32> -> vector<32x16xf32>
    %c0_16 = arith.constant 0 : index
    %c0_17 = arith.constant 0 : index
    %21 = vector.load %arg6[%c0_16, %c0_17] : memref<1x16xf32, #tpu.memory_space<vmem>>, vector<1x16xf32>
    %22 = vector.broadcast %21 : vector<1x16xf32> to vector<32x16xf32>
    %23 = arith.addf %20, %22 : vector<32x16xf32>
    %cst_18 = arith.constant 0.000000e+00 : f32
    %24 = vector.broadcast %cst_18 : f32 to vector<32x16xf32>
    %25 = arith.cmpf oge, %23, %24 : vector<32x16xf32>
    %cst_19 = arith.constant 2.000000e-01 : f32
    %26 = vector.broadcast %cst_19 : f32 to vector<32x16xf32>
    %27 = arith.mulf %26, %23 : vector<32x16xf32>
    %28 = arith.select %25, %23, %27 : vector<32x16xi1>, vector<32x16xf32>
    %29 = arith.truncf %28 : vector<32x16xf32> to vector<32x16xbf16>
    %c0_20 = arith.constant 0 : index
    %c0_21 = arith.constant 0 : index
    %30 = vector.load %arg7[%c0_20, %c0_21] : memref<16x8xbf16, #tpu.memory_space<vmem>>, vector<16x8xbf16>
    %cst_22 = arith.constant dense<0.000000e+00> : vector<32x8xf32>
    %31 = tpu.matmul %29, %30, %cst_22 {dimension_numbers = #tpu.dot_dimension_numbers<[1], [0], [0], [1], [0, 0, 1, 1], [], []>} : vector<32x16xbf16>, vector<16x8xbf16>, vector<32x8xf32> -> vector<32x8xf32>
    %c0_23 = arith.constant 0 : index
    %c0_24 = arith.constant 0 : index
    %32 = vector.load %arg8[%c0_23, %c0_24] : memref<1x8xf32, #tpu.memory_space<vmem>>, vector<1x8xf32>
    %33 = vector.broadcast %32 : vector<1x8xf32> to vector<32x8xf32>
    %34 = arith.addf %31, %33 : vector<32x8xf32>
    %cst_25 = arith.constant 0.000000e+00 : f32
    %35 = vector.broadcast %cst_25 : f32 to vector<32x8xf32>
    %36 = arith.cmpf oge, %34, %35 : vector<32x8xf32>
    %cst_26 = arith.constant 2.000000e-01 : f32
    %37 = vector.broadcast %cst_26 : f32 to vector<32x8xf32>
    %38 = arith.mulf %37, %34 : vector<32x8xf32>
    %39 = arith.select %36, %34, %38 : vector<32x8xi1>, vector<32x8xf32>
    %40 = arith.truncf %39 : vector<32x8xf32> to vector<32x8xbf16>
    %c0_27 = arith.constant 0 : index
    %c0_28 = arith.constant 0 : index
    %41 = vector.load %arg9[%c0_27, %c0_28] : memref<8x128xbf16, #tpu.memory_space<vmem>>, vector<8x128xbf16>
    %cst_29 = arith.constant dense<0.000000e+00> : vector<32x128xf32>
    %42 = tpu.matmul %40, %41, %cst_29 {dimension_numbers = #tpu.dot_dimension_numbers<[1], [0], [0], [1], [0, 0, 1, 1], [], []>} : vector<32x8xbf16>, vector<8x128xbf16>, vector<32x128xf32> -> vector<32x128xf32>
    %c0_30 = arith.constant 0 : index
    %c0_31 = arith.constant 0 : index
    %43 = vector.load %arg10[%c0_30, %c0_31] : memref<1x128xf32, #tpu.memory_space<vmem>>, vector<1x128xf32>
    %44 = vector.broadcast %43 : vector<1x128xf32> to vector<32x128xf32>
    %45 = arith.addf %42, %44 : vector<32x128xf32>
    %c0_32 = arith.constant 0 : index
    %c0_33 = arith.constant 0 : index
    %c0_34 = arith.constant 0 : index
    %46 = vector.load %arg11[%c0_32, %c0_33, %c0_34] : memref<1x32x128xf32, #tpu.memory_space<vmem>>, vector<1x32x128xf32>
    %47 = vector.shape_cast %46 : vector<1x32x128xf32> to vector<32x128xf32>
    %48 = vector.shape_cast %45 : vector<32x128xf32> to vector<1x32x128xf32>
    tpu.vector_store %arg11[%c0_32, %c0_33, %c0_34], %48 {strides = array<i32>} : memref<1x32x128xf32, #tpu.memory_space<vmem>>, vector<1x32x128xf32>,
    return
  }
  func.func @transform_0(%arg0: i32) -> (i32, i32, i32) {
    %c0_i32 = arith.constant 0 : i32
    %c0_i32_0 = arith.constant 0 : i32
    %c0_i32_1 = arith.constant 0 : i32
    return %arg0, %c0_i32, %c0_i32_0 : i32, i32, i32
  }
  func.func @transform_1(%arg0: i32) -> (i32, i32, i32) {
    %c0_i32 = arith.constant 0 : i32
    %c0_i32_0 = arith.constant 0 : i32
    %c0_i32_1 = arith.constant 0 : i32
    return %arg0, %c0_i32, %c0_i32_0 : i32, i32, i32
  }
  func.func @transform_2(%arg0: i32) -> (i32, i32) {
    %c0_i32 = arith.constant 0 : i32
    %c0_i32_0 = arith.constant 0 : i32
    %c0_i32_1 = arith.constant 0 : i32
    return %c0_i32, %c0_i32_0 : i32, i32
  }
  func.func @transform_3(%arg0: i32) -> (i32, i32) {
    %c0_i32 = arith.constant 0 : i32
    %c0_i32_0 = arith.constant 0 : i32
    %c0_i32_1 = arith.constant 0 : i32
    return %c0_i32, %c0_i32_0 : i32, i32
  }
  func.func @transform_4(%arg0: i32) -> (i32, i32) {
    %c0_i32 = arith.constant 0 : i32
    %c0_i32_0 = arith.constant 0 : i32
    %c0_i32_1 = arith.constant 0 : i32
    return %c0_i32, %c0_i32_0 : i32, i32
  }
  func.func @transform_5(%arg0: i32) -> (i32, i32) {
    %c0_i32 = arith.constant 0 : i32
    %c0_i32_0 = arith.constant 0 : i32
    %c0_i32_1 = arith.constant 0 : i32
    return %c0_i32, %c0_i32_0 : i32, i32
  }
  func.func @transform_6(%arg0: i32) -> (i32, i32) {
    %c0_i32 = arith.constant 0 : i32
    %c0_i32_0 = arith.constant 0 : i32
    %c0_i32_1 = arith.constant 0 : i32
    return %c0_i32, %c0_i32_0 : i32, i32
  }
  func.func @transform_7(%arg0: i32) -> (i32, i32) {
    %c0_i32 = arith.constant 0 : i32
    %c0_i32_0 = arith.constant 0 : i32
    %c0_i32_1 = arith.constant 0 : i32
    return %c0_i32, %c0_i32_0 : i32, i32
  }
  func.func @transform_8(%arg0: i32) -> (i32, i32) {
    %c0_i32 = arith.constant 0 : i32
    %c0_i32_0 = arith.constant 0 : i32
    %c0_i32_1 = arith.constant 0 : i32
    return %c0_i32, %c0_i32_0 : i32, i32
  }
  func.func @transform_9(%arg0: i32) -> (i32, i32) {
    %c0_i32 = arith.constant 0 : i32
    %c0_i32_0 = arith.constant 0 : i32
    %c0_i32_1 = arith.constant 0 : i32
    return %c0_i32, %c0_i32_0 : i32, i32
  }
  func.func @transform_10(%arg0: i32) -> (i32, i32, i32) {
    %c0_i32 = arith.constant 0 : i32
    %c0_i32_0 = arith.constant 0 : i32
    %c0_i32_1 = arith.constant 0 : i32
    return %arg0, %c0_i32, %c0_i32_0 : i32, i32, i32
  }
}

</mosaic_0001>

<llo_original>
// kernel: tpu_custom_call.1
$region0: #{tpu_custom_call.1}
  #allocation0 [shape = 'u32[]', space=smem, size = 0x4, offset = 0x4, fixed_abs, tag = 'smem constant byte address 0x4 - core index']
  #allocation1 [shape = 'u32[144,128]{1,0:T(1,128)}', space=vmem, size = 0x12000, scoped, tag = 'internal scratch']
  %s0 = inlined_call_operand.vmem [shape: bf16[2,32,64], index: 0, kind: input, shape index: {}]
  %s1 = inlined_call_operand.vmem [shape: bf16[2,32,32], index: 1, kind: input, shape index: {}]
  %s2 = inlined_call_operand.vmem [shape: bf16[64,32], index: 2, kind: input, shape index: {}]
  %s3 = inlined_call_operand.hbm [shape: f32[1,32], index: 3, kind: input, shape index: {}]
  %s4 = inlined_call_operand.vmem [shape: bf16[32,16], index: 4, kind: input, shape index: {}]
  %s5 = inlined_call_operand.hbm [shape: f32[1,16], index: 5, kind: input, shape index: {}]
  %s6 = inlined_call_operand.vmem [shape: bf16[16,8], index: 6, kind: input, shape index: {}]
  %s7 = inlined_call_operand.hbm [shape: f32[1,8], index: 7, kind: input, shape index: {}]
  %s8 = inlined_call_operand.vmem [shape: bf16[8,128], index: 8, kind: input, shape index: {}]
  %s9 = inlined_call_operand.vmem [shape: f32[1,128], index: 9, kind: input, shape index: {}]
  %s10 = inlined_call_operand.hbm [shape: f32[2,32,128], index: 10, kind: output, shape index: {}]
  %s11 = sld [smem:[#allocation0]]
  $region85: #{tpu_custom_call.1} parent=0
    _
  %s13 = ssub.s32 1, %s11
  %s14 = scalar_select 0, %s13, %s11
  $region1: #{tpu_custom_call.1} parent=0
    #allocation2 [shape = 'u8[512]{0}', space=vmem, size = 0x400, scoped, tag = 'input window, operand 3, single buffered']
    #allocation3 [shape = 's32[2]{0}', space=sflag, size = 0x8, scoped, tag = 'scoped memory for tpu_custom_call.1']
    #allocation4 [shape = 's32[2]{0}', space=sflag, size = 0x8, scoped, tag = 'scoped memory for tpu_custom_call.1']
    #allocation5 [shape = 'u8[512]{0}', space=vmem, size = 0x400, scoped, tag = 'input window, operand 5, single buffered']
    #allocation6 [shape = 's32[1]{0}', space=sflag, size = 0x4, scoped, tag = 'scoped memory for tpu_custom_call.1']
    #allocation7 [shape = 'u8[512]{0}', space=vmem, size = 0x400, scoped, tag = 'input window, operand 7, single buffered']
    #allocation8 [shape = 'u8[32768]{0}', space=vmem, size = 0x8000, scoped, tag = 'output window, operand 0']
    %15 = vsyncpa [#allocation3], 0
    %16 = vsyncpa [#allocation6], 0
    %17 = vsyncpa [#allocation4], 0
    %s18 = scalar_lea.sflag [#allocation4], 1
    %19 = vsyncpa %s18, 0
    loop: start=0, step=1, limit=4
    $region2: #{tpu_custom_call.1} parent=1 // loop_pre_header
      _
    $region3: #{tpu_custom_call.1} parent=1 // loop_header
      %s21 = sphi 0, %s25
      %p22 = scmp.ge.s32.totalorder %s21, 4
      %s31 = sphi 0, %s33
      %s34 = sphi 0, %s31
      %s35 = sphi 0, %s34
      %s51 = sphi 0, %s35
      %s57 = sphi 0, %s59
      %s60 = sphi 0, %s57
      %s61 = sphi 0, %s60
      %s77 = sphi 0, %s61
      %s81 = sphi 0, %s81
      %s83 = sphi 0, %s81
      %s84 = sphi 0, %s83
      %s98 = sphi 0, %s84
      %s102 = sphi 0, %s102
      %s104 = sphi 0, %s102
      %s105 = sphi 0, %s104
      %s119 = sphi 0, %s105
      %s123 = sphi 0, %s123
      %s125 = sphi 0, %s123
      %s126 = sphi 0, %s125
      %s140 = sphi 0, %s126
      %s144 = sphi 0, %s144
      %s146 = sphi 0, %s144
      %s147 = sphi 0, %s146
      %s161 = sphi 0, %s147
      %s165 = sphi 0, %s165
      %s167 = sphi 0, %s165
      %s168 = sphi 0, %s167
      %s182 = sphi 0, %s168
      %s186 = sphi 0, %s186
      %s188 = sphi 0, %s186
      %s189 = sphi 0, %s188
      %s203 = sphi 0, %s189
      %s207 = sphi 0, %s207
      %s209 = sphi 0, %s207
      %s210 = sphi 0, %s209
      %s224 = sphi 0, %s210
      %s228 = sphi 0, %s228
      %s230 = sphi 0, %s228
      %s231 = sphi 0, %s230
      %s245 = sphi 0, %s231
      %s251 = sphi 0, %s253
      %s254 = sphi 0, %s251
      %s255 = sphi 0, %s254
      %s271 = sphi 0, %s255
    $region4: #{tpu_custom_call.1} parent=1 // loop_header_branch
      %24 = sbr.rel (%p22) target = $region8
    $region5: #{tpu_custom_call.1} parent=1 // loop_body
      %s26 = ssub.s32 %s21, 1
      %s27 = ssub.s32 %s21, 2
      %s28 = sadd.s32 %s21, 1
      %s29 = ssub.s32 %s21, %s28
      %p30 = scmp.eq.s32.totalorder %s29, 0
      %s32 = sadd.s32 %s31, 1
      %s33 = scalar_select %p30, %s31, %s32
      %p36 = pneg %p30
      %p37 = scmp.eq.s32.totalorder %s21, 1
      %p38 = por %p36, %p37
      %p39 = scmp.ne.s32.totalorder %s31, %s34
      %p40 = scmp.eq.s32.totalorder %s21, 0
      %p41 = por %p39, %p40
      %p42 = scmp.ne.s32.totalorder %s31, %s34
      %p43 = scmp.eq.s32.totalorder %s26, 1
      %p44 = por %p42, %p43
      %p45 = scmp.ne.s32.totalorder %s34, %s35
      %p46 = scmp.eq.s32.totalorder %s26, 0
      %p47 = por %p45, %p46
      %p48 = scmp.ne.s32.totalorder %s34, %s35
      %p49 = scmp.eq.s32.totalorder %s27, 1
      %p50 = por %p48, %p49
      %p52 = scmp.ne.s32.totalorder %s35, %s51
      %p53 = scmp.eq.s32.totalorder %s27, 0
      %p54 = por %p52, %p53
      %s55 = ssub.s32 %s21, %s28
      %p56 = scmp.eq.s32.totalorder %s55, 0
      %s58 = sadd.s32 %s57, 1
      %s59 = scalar_select %p56, %s57, %s58
      %p62 = pneg %p56
      %p63 = scmp.eq.s32.totalorder %s21, 1
      %p64 = por %p62, %p63
      %p65 = scmp.ne.s32.totalorder %s57, %s60
      %p66 = scmp.eq.s32.totalorder %s21, 0
      %p67 = por %p65, %p66
      %p68 = scmp.ne.s32.totalorder %s57, %s60
      %p69 = scmp.eq.s32.totalorder %s26, 1
      %p70 = por %p68, %p69
      %p71 = scmp.ne.s32.totalorder %s60, %s61
      %p72 = scmp.eq.s32.totalorder %s26, 0
      %p73 = por %p71, %p72
      %p74 = scmp.ne.s32.totalorder %s60, %s61
      %p75 = scmp.eq.s32.totalorder %s27, 1
      %p76 = por %p74, %p75
      %p78 = scmp.ne.s32.totalorder %s61, %s77
      %p79 = scmp.eq.s32.totalorder %s27, 0
      %p80 = por %p78, %p79
      %s82 = sadd.s32 %s81, 1
      %p85 = scmp.eq.s32.totalorder %s21, 1
      %p86 = scmp.ne.s32.totalorder %s81, %s83
      %p87 = scmp.eq.s32.totalorder %s21, 0
      %p88 = por %p86, %p87
      %p89 = scmp.ne.s32.totalorder %s81, %s83
      %p90 = scmp.eq.s32.totalorder %s26, 1
      %p91 = por %p89, %p90
      %p92 = scmp.ne.s32.totalorder %s83, %s84
      %p93 = scmp.eq.s32.totalorder %s26, 0
      %p94 = por %p92, %p93
      %p95 = scmp.ne.s32.totalorder %s83, %s84
      %p96 = scmp.eq.s32.totalorder %s27, 1
      %p97 = por %p95, %p96
      %p99 = scmp.ne.s32.totalorder %s84, %s98
      %p100 = scmp.eq.s32.totalorder %s27, 0
      %p101 = por %p99, %p100
      %s103 = sadd.s32 %s102, 1
      %p106 = scmp.eq.s32.totalorder %s21, 1
      %p107 = scmp.ne.s32.totalorder %s102, %s104
      %p108 = scmp.eq.s32.totalorder %s21, 0
      %p109 = por %p107, %p108
      %p110 = scmp.ne.s32.totalorder %s102, %s104
      %p111 = scmp.eq.s32.totalorder %s26, 1
      %p112 = por %p110, %p111
      %p113 = scmp.ne.s32.totalorder %s104, %s105
      %p114 = scmp.eq.s32.totalorder %s26, 0
      %p115 = por %p113, %p114
      %p116 = scmp.ne.s32.totalorder %s104, %s105
      %p117 = scmp.eq.s32.totalorder %s27, 1
      %p118 = por %p116, %p117
      %p120 = scmp.ne.s32.totalorder %s105, %s119
      %p121 = scmp.eq.s32.totalorder %s27, 0
      %p122 = por %p120, %p121
      %s124 = sadd.s32 %s123, 1
      %p127 = scmp.eq.s32.totalorder %s21, 1
      %p128 = scmp.ne.s32.totalorder %s123, %s125
      %p129 = scmp.eq.s32.totalorder %s21, 0
      %p130 = por %p128, %p129
      %p131 = scmp.ne.s32.totalorder %s123, %s125
      %p132 = scmp.eq.s32.totalorder %s26, 1
      %p133 = por %p131, %p132
      %p134 = scmp.ne.s32.totalorder %s125, %s126
      %p135 = scmp.eq.s32.totalorder %s26, 0
      %p136 = por %p134, %p135
      %p137 = scmp.ne.s32.totalorder %s125, %s126
      %p138 = scmp.eq.s32.totalorder %s27, 1
      %p139 = por %p137, %p138
      %p141 = scmp.ne.s32.totalorder %s126, %s140
      %p142 = scmp.eq.s32.totalorder %s27, 0
      %p143 = por %p141, %p142
      %s145 = sadd.s32 %s144, 1
      %p148 = scmp.eq.s32.totalorder %s21, 1
      %p149 = scmp.ne.s32.totalorder %s144, %s146
      %p150 = scmp.eq.s32.totalorder %s21, 0
      %p151 = por %p149, %p150
      %p152 = scmp.ne.s32.totalorder %s144, %s146
      %p153 = scmp.eq.s32.totalorder %s26, 1
      %p154 = por %p152, %p153
      %p155 = scmp.ne.s32.totalorder %s146, %s147
      %p156 = scmp.eq.s32.totalorder %s26, 0
      %p157 = por %p155, %p156
      %p158 = scmp.ne.s32.totalorder %s146, %s147
      %p159 = scmp.eq.s32.totalorder %s27, 1
      %p160 = por %p158, %p159
      %p162 = scmp.ne.s32.totalorder %s147, %s161
      %p163 = scmp.eq.s32.totalorder %s27, 0
      %p164 = por %p162, %p163
      %s166 = sadd.s32 %s165, 1
      %p169 = scmp.eq.s32.totalorder %s21, 1
      %p170 = scmp.ne.s32.totalorder %s165, %s167
      %p171 = scmp.eq.s32.totalorder %s21, 0
      %p172 = por %p170, %p171
      %p173 = scmp.ne.s32.totalorder %s165, %s167
      %p174 = scmp.eq.s32.totalorder %s26, 1
      %p175 = por %p173, %p174
      %p176 = scmp.ne.s32.totalorder %s167, %s168
      %p177 = scmp.eq.s32.totalorder %s26, 0
      %p178 = por %p176, %p177
      %p179 = scmp.ne.s32.totalorder %s167, %s168
      %p180 = scmp.eq.s32.totalorder %s27, 1
      %p181 = por %p179, %p180
      %p183 = scmp.ne.s32.totalorder %s168, %s182
      %p184 = scmp.eq.s32.totalorder %s27, 0
      %p185 = por %p183, %p184
      %s187 = sadd.s32 %s186, 1
      %p190 = scmp.eq.s32.totalorder %s21, 1
      %p191 = scmp.ne.s32.totalorder %s186, %s188
      %p192 = scmp.eq.s32.totalorder %s21, 0
      %p193 = por %p191, %p192
      %p194 = scmp.ne.s32.totalorder %s186, %s188
      %p195 = scmp.eq.s32.totalorder %s26, 1
      %p196 = por %p194, %p195
      %p197 = scmp.ne.s32.totalorder %s188, %s189
      %p198 = scmp.eq.s32.totalorder %s26, 0
      %p199 = por %p197, %p198
      %p200 = scmp.ne.s32.totalorder %s188, %s189
      %p201 = scmp.eq.s32.totalorder %s27, 1
      %p202 = por %p200, %p201
      %p204 = scmp.ne.s32.totalorder %s189, %s203
      %p205 = scmp.eq.s32.totalorder %s27, 0
      %p206 = por %p204, %p205
      %s208 = sadd.s32 %s207, 1
      %p211 = scmp.eq.s32.totalorder %s21, 1
      %p212 = scmp.ne.s32.totalorder %s207, %s209
      %p213 = scmp.eq.s32.totalorder %s21, 0
      %p214 = por %p212, %p213
      %p215 = scmp.ne.s32.totalorder %s207, %s209
      %p216 = scmp.eq.s32.totalorder %s26, 1
      %p217 = por %p215, %p216
      %p218 = scmp.ne.s32.totalorder %s209, %s210
      %p219 = scmp.eq.s32.totalorder %s26, 0
      %p220 = por %p218, %p219
      %p221 = scmp.ne.s32.totalorder %s209, %s210
      %p222 = scmp.eq.s32.totalorder %s27, 1
      %p223 = por %p221, %p222
      %p225 = scmp.ne.s32.totalorder %s210, %s224
      %p226 = scmp.eq.s32.totalorder %s27, 0
      %p227 = por %p225, %p226
      %s229 = sadd.s32 %s228, 1
      %p232 = scmp.eq.s32.totalorder %s21, 1
      %p233 = scmp.ne.s32.totalorder %s228, %s230
      %p234 = scmp.eq.s32.totalorder %s21, 0
      %p235 = por %p233, %p234
      %p236 = scmp.ne.s32.totalorder %s228, %s230
      %p237 = scmp.eq.s32.totalorder %s26, 1
      %p238 = por %p236, %p237
      %p239 = scmp.ne.s32.totalorder %s230, %s231
      %p240 = scmp.eq.s32.totalorder %s26, 0
      %p241 = por %p239, %p240
      %p242 = scmp.ne.s32.totalorder %s230, %s231
      %p243 = scmp.eq.s32.totalorder %s27, 1
      %p244 = por %p242, %p243
      %p246 = scmp.ne.s32.totalorder %s231, %s245
      %p247 = scmp.eq.s32.totalorder %s27, 0
      %p248 = por %p246, %p247
      %s249 = ssub.s32 %s21, %s28
      %p250 = scmp.eq.s32.totalorder %s249, 0
      %s252 = sadd.s32 %s251, 1
      %s253 = scalar_select %p250, %s251, %s252
      %p256 = pneg %p250
      %p257 = scmp.eq.s32.totalorder %s21, 1
      %p258 = por %p256, %p257
      %p259 = scmp.ne.s32.totalorder %s251, %s254
      %p260 = scmp.eq.s32.totalorder %s21, 0
      %p261 = por %p259, %p260
      %p262 = scmp.ne.s32.totalorder %s251, %s254
      %p263 = scmp.eq.s32.totalorder %s26, 1
      %p264 = por %p262, %p263
      %p265 = scmp.ne.s32.totalorder %s254, %s255
      %p266 = scmp.eq.s32.totalorder %s26, 0
      %p267 = por %p265, %p266
      %p268 = scmp.ne.s32.totalorder %s254, %s255
      %p269 = scmp.eq.s32.totalorder %s27, 1
      %p270 = por %p268, %p269
      %p272 = scmp.ne.s32.totalorder %s255, %s271
      %p273 = scmp.eq.s32.totalorder %s27, 0
      %p274 = por %p272, %p273
      %p275 = scmp.le.s32.totalorder 1, %s21
      %p276 = scmp.lt.s32.totalorder %s21, 3
      %p277 = pnand %p275, %p276
      %p278 = pneg %p277
      // Predicated region
      $region9: #{tpu_custom_call.1} parent=5 // pred_check
        _
      $region10: #{tpu_custom_call.1} parent=5 // pred_check_branch
        %280 = sbr.rel (%p277) target = $region12
      $region11: #{tpu_custom_call.1} parent=5 // pred_region
        %s281 = ssub.s32 %s21, 1
        // Predicated region
        $region13: #{tpu_custom_call.1} parent=11 // pred_check
          %p282 = pneg %p94
        $region14: #{tpu_custom_call.1} parent=11 // pred_check_branch
          %284 = sbr.rel (%p282) target = $region16
        $region15: #{tpu_custom_call.1} parent=11 // pred_region
          _
        $region16: #{tpu_custom_call.1} parent=11 // pred_fallthru
          _
        // Predicated region
        $region17: #{tpu_custom_call.1} parent=11 // pred_check
          %p285 = pneg %p115
        $region18: #{tpu_custom_call.1} parent=11 // pred_check_branch
          %287 = sbr.rel (%p285) target = $region20
        $region19: #{tpu_custom_call.1} parent=11 // pred_region
          %s289 = ssub.s32 16, 16
          %290 = vsyncadd [#allocation3], %s289
          %s292 = sshll.u32 [#allocation2], 4
          %s293 = int_to_ptr.vmem [resolvable:$true] %s292
          %295 = dma.hbm_to_vmem [thread:$0]  %s3, 16, %s293, [#allocation3]
        $region20: #{tpu_custom_call.1} parent=11 // pred_fallthru
          _
        // Predicated region
        $region21: #{tpu_custom_call.1} parent=11 // pred_check
          %p296 = pneg %p136
        $region22: #{tpu_custom_call.1} parent=11 // pred_check_branch
          %298 = sbr.rel (%p296) target = $region24
        $region23: #{tpu_custom_call.1} parent=11 // pred_region
          _
        $region24: #{tpu_custom_call.1} parent=11 // pred_fallthru
          _
        // Predicated region
        $region25: #{tpu_custom_call.1} parent=11 // pred_check
          %p299 = pneg %p157
        $region26: #{tpu_custom_call.1} parent=11 // pred_check_branch
          %301 = sbr.rel (%p299) target = $region28
        $region27: #{tpu_custom_call.1} parent=11 // pred_region
          %s303 = ssub.s32 16, 16
          %304 = vsyncadd [#allocation6], %s303
          %s306 = sshll.u32 [#allocation5], 4
          %s307 = int_to_ptr.vmem [resolvable:$true] %s306
          %309 = dma.hbm_to_vmem [thread:$0]  %s5, 16, %s307, [#allocation6]
        $region28: #{tpu_custom_call.1} parent=11 // pred_fallthru
          _
        // Predicated region
        $region29: #{tpu_custom_call.1} parent=11 // pred_check
          %p310 = pneg %p178
        $region30: #{tpu_custom_call.1} parent=11 // pred_check_branch
          %312 = sbr.rel (%p310) target = $region32
        $region31: #{tpu_custom_call.1} parent=11 // pred_region
          _
        $region32: #{tpu_custom_call.1} parent=11 // pred_fallthru
          _
        // Predicated region
        $region33: #{tpu_custom_call.1} parent=11 // pred_check
          %p313 = pneg %p199
        $region34: #{tpu_custom_call.1} parent=11 // pred_check_branch
          %315 = sbr.rel (%p313) target = $region36
        $region35: #{tpu_custom_call.1} parent=11 // pred_region
          %s317 = ssub.s32 16, 16
          %318 = vsyncadd [#allocation6], %s317
          %s320 = sshll.u32 [#allocation7], 4
          %s321 = int_to_ptr.vmem [resolvable:$true] %s320
          %323 = dma.hbm_to_vmem [thread:$0]  %s7, 16, %s321, [#allocation6]
        $region36: #{tpu_custom_call.1} parent=11 // pred_fallthru
          _
        // Predicated region
        $region37: #{tpu_custom_call.1} parent=11 // pred_check
          %p324 = pneg %p220
        $region38: #{tpu_custom_call.1} parent=11 // pred_check_branch
          %326 = sbr.rel (%p324) target = $region40
        $region39: #{tpu_custom_call.1} parent=11 // pred_region
          _
        $region40: #{tpu_custom_call.1} parent=11 // pred_fallthru
          _
        // Predicated region
        $region41: #{tpu_custom_call.1} parent=11 // pred_check
          %p327 = pneg %p241
        $region42: #{tpu_custom_call.1} parent=11 // pred_check_branch
          %329 = sbr.rel (%p327) target = $region44
        $region43: #{tpu_custom_call.1} parent=11 // pred_region
          _
        $region44: #{tpu_custom_call.1} parent=11 // pred_fallthru
          _
      $region12: #{tpu_custom_call.1} parent=5 // pred_fallthru
        _
      %p330 = scmp.lt.s32.totalorder %s21, 2
      // Predicated region
      $region45: #{tpu_custom_call.1} parent=5 // pred_check
        %p331 = pneg %p330
      $region46: #{tpu_custom_call.1} parent=5 // pred_check_branch
        %333 = sbr.rel (%p331) target = $region48
      $region47: #{tpu_custom_call.1} parent=5 // pred_region
        // Predicated region
        $region49: #{tpu_custom_call.1} parent=47 // pred_check
          %p334 = pneg %p41
        $region50: #{tpu_custom_call.1} parent=47 // pred_check_branch
          %336 = sbr.rel (%p334) target = $region52
        $region51: #{tpu_custom_call.1} parent=47 // pred_region
          %p337 = scmp.lt.s32.totalorder %s21, 1
          %s338 = scalar_select %p337, %s21, 1
          %s339 = smul.addr %s338, 4
          %s340 = smul.addr %s339, 4
          %s341 = scalar_lea.vmem %s0, %s340
        $region52: #{tpu_custom_call.1} parent=47 // pred_fallthru
          _
        // Predicated region
        $region53: #{tpu_custom_call.1} parent=47 // pred_check
          %p342 = pneg %p67
        $region54: #{tpu_custom_call.1} parent=47 // pred_check_branch
          %344 = sbr.rel (%p342) target = $region56
        $region55: #{tpu_custom_call.1} parent=47 // pred_region
          %p345 = scmp.lt.s32.totalorder %s21, 1
          %s346 = scalar_select %p345, %s21, 1
          %s347 = smul.addr %s346, 4
          %s348 = smul.addr %s347, 4
          %s349 = scalar_lea.vmem %s1, %s348
        $region56: #{tpu_custom_call.1} parent=47 // pred_fallthru
          _
      $region48: #{tpu_custom_call.1} parent=5 // pred_fallthru
        _
      %p350 = scmp.le.s32.totalorder 1, %s21
      %p351 = scmp.lt.s32.totalorder %s21, 3
      %p352 = pnand %p350, %p351
      %p353 = pneg %p352
      // Predicated region
      $region57: #{tpu_custom_call.1} parent=5 // pred_check
        _
      $region58: #{tpu_custom_call.1} parent=5 // pred_check_branch
        %355 = sbr.rel (%p352) target = $region60
      $region59: #{tpu_custom_call.1} parent=5 // pred_region
        %s356 = ssub.s32 %s21, 1
        // Predicated region
        $region61: #{tpu_custom_call.1} parent=59 // pred_check
          %p357 = pneg %p115
        $region62: #{tpu_custom_call.1} parent=59 // pred_check_branch
          %359 = sbr.rel (%p357) target = $region64
        $region63: #{tpu_custom_call.1} parent=59 // pred_region
          %360 = dma.done [#allocation3], 16
        $region64: #{tpu_custom_call.1} parent=59 // pred_fallthru
          _
        // Predicated region
        $region65: #{tpu_custom_call.1} parent=59 // pred_check
          %p361 = pneg %p157
        $region66: #{tpu_custom_call.1} parent=59 // pred_check_branch
          %363 = sbr.rel (%p361) target = $region68
        $region67: #{tpu_custom_call.1} parent=59 // pred_region
          %364 = dma.done [#allocation6], 16
        $region68: #{tpu_custom_call.1} parent=59 // pred_fallthru
          _
        // Predicated region
        $region69: #{tpu_custom_call.1} parent=59 // pred_check
          %p365 = pneg %p199
        $region70: #{tpu_custom_call.1} parent=59 // pred_check_branch
          %367 = sbr.rel (%p365) target = $region72
        $region71: #{tpu_custom_call.1} parent=59 // pred_region
          %368 = dma.done [#allocation6], 16
        $region72: #{tpu_custom_call.1} parent=59 // pred_fallthru
          _
        %p369 = scmp.lt.s32.totalorder %s26, 1
        %s370 = scalar_select %p369, %s26, 1
        %s371 = smul.addr %s370, 4
        %s372 = smul.addr %s371, 4
        %s373 = scalar_lea.vmem %s0, %s372
        %p374 = pneg %p47
        %p375 = pneg %p44
        %p376 = scmp.lt.s32.totalorder %s26, 1
        %s377 = scalar_select %p376, %s26, 1
        %s378 = smul.addr %s377, 4
        %s379 = smul.addr %s378, 4
        %s380 = scalar_lea.vmem %s1, %s379
        %p381 = pneg %p73
        %p382 = pneg %p70
        %p383 = pneg %p94
        %p384 = pneg %p91
        %p385 = pneg %p115
        %p386 = pneg %p112
        %p387 = pneg %p136
        %p388 = pneg %p133
        %p389 = pneg %p157
        %p390 = pneg %p154
        %p391 = pneg %p178
        %p392 = pneg %p175
        %p393 = pneg %p199
        %p394 = pneg %p196
        %p395 = pneg %p220
        %p396 = pneg %p217
        %p397 = pneg %p241
        %p398 = pneg %p238
        %p399 = pneg %p267
        %p400 = pneg %p264
        %s401 = sand.u32 %s254, 1
        %s402 = scalar_lea.sflag [#allocation4], %s401
        %s403 = sand.u32 %s254, 1
        %s404 = smul.addr %s403, 32
        %s405 = scalar_lea.vmem [#allocation8], %s404
        %p406 = scmp.lt.s32.totalorder %s26, 1
        %s407 = scalar_select %p406, %s26, 1
        %s408 = smul.addr %s407, 4
        %s409 = smul.addr %s408, 4
        %s410 = scalar_lea.vmem %s0, %s409
        %p411 = scmp.lt.s32.totalorder %s26, 1
        %s412 = scalar_select %p411, %s26, 1
        %s413 = smul.addr %s412, 4
        %s414 = smul.addr %s413, 4
        %s415 = scalar_lea.vmem %s1, %s414
        %v417 = vld [vmem:[%s410] sm:$0xf]
        %v418 = vld [vmem:[%s410 + $0x4] sm:$0xf]
        %v419 = vld [vmem:[%s410 + $0x8] sm:$0xf]
        %v420 = vld [vmem:[%s410 + $0xc] sm:$0xf]
        %v421 = vld [vmem:[%s415] sm:$0xf]
        %v422 = vld [vmem:[%s415 + $0x4] sm:$0xf]
        %v423 = vld [vmem:[%s415 + $0x8] sm:$0xf]
        %v424 = vld [vmem:[%s415 + $0xc] sm:$0xf]
        %v425 = vld [vmem:[%s2] sm:$0xf]
        %v426 = vld [vmem:[%s2 + $0x4] sm:$0xf]
        %v427 = vld [vmem:[%s2 + $0x8] sm:$0xf]
        %v428 = vld [vmem:[%s2 + $0xc] sm:$0xf]
        %v429 = vld [vmem:[%s2 + $0x10] sm:$0xf]
        %v430 = vld [vmem:[%s2 + $0x14] sm:$0xf]
        %v431 = vld [vmem:[%s2 + $0x18] sm:$0xf]
        %v432 = vld [vmem:[%s2 + $0x1c] sm:$0xf]
        %v437 = vunpack.c.l.b16 %v417
        %v438 = vunpack.c.l.b16 %v418
        %v439 = vunpack.c.l.b16 %v419
        %v440 = vunpack.c.l.b16 %v420
        %v441 = vpack.c.b16 %v438, %v437
        %v442 = vpack.c.b16 %v440, %v439
        %v451 = vunpack.c.l.b16 %v425
        %v452 = vunpack.c.l.b16 %v426
        %v453 = vunpack.c.l.b16 %v427
        %v454 = vunpack.c.l.b16 %v428
        %v455 = vunpack.c.l.b16 %v429
        %v456 = vunpack.c.l.b16 %v430
        %v457 = vunpack.c.l.b16 %v431
        %v458 = vunpack.c.l.b16 %v432
        %v459 = vpack.c.b16 %v452, %v451
        %v460 = vpack.c.b16 %v454, %v453
        %v461 = vpack.c.b16 %v456, %v455
        %v462 = vpack.c.b16 %v458, %v457
        %vm467 = vcmask 523264
        %v469 = vsel %vm467, %v441, 0
        %v472 = vsel %vm467, %v442, 0
        %474 = vmatprep.subr.bf16.mxu0 0
        %475 = vmatpush1.bf16.msra.mxu0 0
        %476 = vmatprep.subr.bf16.mxu0 0
        %477 = vmatpush1.bf16.msra.mxu0 0
        %478 = vmatprep.subr.bf16.mxu0 0
        %479 = vmatpush1.bf16.msra.mxu0 0
        %480 = vmatprep.subr.bf16.mxu0 0
        %481 = vmatpush1.bf16.msra.mxu0 0
        %482 = vmatprep.subr.bf16.mxu0 0
        %483 = vmatpush1.bf16.msra.mxu0 %v462
        %484 = vmatprep.subr.bf16.mxu0 0
        %485 = vmatpush1.bf16.msra.mxu0 %v461
        %486 = vmatprep.subr.bf16.mxu0 0
        %487 = vmatpush1.bf16.msra.mxu0 %v460
        %488 = vmatprep.subr.bf16.mxu0 0
        %489 = vmatpush1.bf16.msra.mxu0 %v459
        %490 = vmatprep.subr.bf16.mxu0 0
        %491 = vmatpush2.bf16.msra.mxu0 0
        %492 = vmatprep.subr.bf16.mxu0 0
        %493 = vmatpush2.bf16.msra.mxu0 0
        %494 = vmatprep.subr.bf16.mxu0 0
        %495 = vmatpush2.bf16.msra.mxu0 0
        %496 = vmatprep.subr.bf16.mxu0 0
        %497 = vmatpush2.bf16.msra.mxu0 0
        %498 = vmatprep.subr.bf16.mxu0 0
        %499 = vmatpush2.bf16.msra.mxu0 0
        %500 = vmatprep.subr.bf16.mxu0 0
        %501 = vmatpush2.bf16.msra.mxu0 0
        %502 = vmatprep.subr.bf16.mxu0 0
        %503 = vmatpush2.bf16.msra.mxu0 0
        %504 = vmatprep.subr.bf16.mxu0 0
        %505 = vmatpush2.bf16.msra.mxu0 0
        %506 = vmatprep.mubr.bf16.mxu0 0
        %507 = vmatmul.mubr.bf16.gmra.mxu0 %v469
        %v508 = vpop.f32.mrf.mxu0
        %v509 = vadd.f32 0.0, %v508
        %v510 = vpop.f32.mrf.mxu0
        %v511 = vpop.f32.mrf.mxu0
        %v512 = vadd.f32 0.0, %v511
        %v513 = vpop.f32.mrf.mxu0
        %514 = vmatprep.mubr.bf16.mxu0 0
        %515 = vmatmul.mubr.bf16.gmra.mxu0 %v472
        %v516 = vpop.f32.mrf.mxu0
        %v517 = vadd.f32 0.0, %v516
        %v518 = vpop.f32.mrf.mxu0
        %v519 = vpop.f32.mrf.mxu0
        %v520 = vadd.f32 0.0, %v519
        %v521 = vpop.f32.mrf.mxu0
        %522 = vdwg.mxu0
        %v523 = vpack.c.bf16 %v512, %v509
        %v524 = vpack.c.bf16 %v520, %v517
        %v525 = vld [vmem:[#allocation2] sm:$0x1]
        %v527 = vlaneseq
        %v528 = vshrl.u32 %v527, 7
        %v529 = vsub.s32 0, %v528
        %v530 = vrot.slane %v525, %v529
        %v536 = vunpack.c.l.b16 %v421
        %v537 = vunpack.c.l.b16 %v422
        %v538 = vunpack.c.l.b16 %v423
        %v539 = vunpack.c.l.b16 %v424
        %v540 = vpack.c.b16 %v537, %v536
        %v541 = vpack.c.b16 %v539, %v538
        %vm542 = vcmask 261120
        %v544 = vsel %vm542, %v540, 0
        %v547 = vsel %vm542, %v541, 0
        %549 = vmatprep.subr.bf16.mxu0 0
        %550 = vmatpush1.bf16.msra.mxu0 0
        %551 = vmatprep.subr.bf16.mxu0 0
        %552 = vmatpush1.bf16.msra.mxu0 0
        %553 = vmatprep.subr.bf16.mxu0 0
        %554 = vmatpush1.bf16.msra.mxu0 0
        %555 = vmatprep.subr.bf16.mxu0 0
        %556 = vmatpush1.bf16.msra.mxu0 0
        %557 = vmatprep.subr.bf16.mxu0 0
        %558 = vmatpush1.bf16.msra.mxu0 0
        %559 = vmatprep.subr.bf16.mxu0 0
        %560 = vmatpush1.bf16.msra.mxu0 0
        %561 = vmatprep.subr.bf16.mxu0 0
        %562 = vmatpush1.bf16.msra.mxu0 %v524
        %563 = vmatprep.subr.bf16.mxu0 0
        %564 = vmatpush1.bf16.msra.mxu0 %v523
        %565 = vmatprep.subr.bf16.mxu0 0
        %566 = vmatpush2.bf16.msra.mxu0 0
        %567 = vmatprep.subr.bf16.mxu0 0
        %568 = vmatpush2.bf16.msra.mxu0 0
        %569 = vmatprep.subr.bf16.mxu0 0
        %570 = vmatpush2.bf16.msra.mxu0 0
        %571 = vmatprep.subr.bf16.mxu0 0
        %572 = vmatpush2.bf16.msra.mxu0 0
        %573 = vmatprep.subr.bf16.mxu0 0
        %574 = vmatpush2.bf16.msra.mxu0 0
        %575 = vmatprep.subr.bf16.mxu0 0
        %576 = vmatpush2.bf16.msra.mxu0 0
        %577 = vmatprep.subr.bf16.mxu0 0
        %578 = vmatpush2.bf16.msra.mxu0 0
        %579 = vmatprep.subr.bf16.mxu0 0
        %580 = vmatpush2.bf16.msra.mxu0 0
        %581 = vmatprep.mubr.bf16.mxu0 0
        %582 = vmatmul.mubr.bf16.gmra.mxu0 %v544
        %v583 = vpop.f32.mrf.mxu0
        %v584 = vadd.f32 %v530, %v583
        %v585 = vpop.f32.mrf.mxu0
        %v586 = vpop.f32.mrf.mxu0
        %v587 = vadd.f32 %v530, %v586
        %v588 = vpop.f32.mrf.mxu0
        %589 = vmatprep.mubr.bf16.mxu0 0
        %590 = vmatmul.mubr.bf16.gmra.mxu0 %v547
        %v591 = vpop.f32.mrf.mxu0
        %v592 = vadd.f32 %v530, %v591
        %v593 = vpop.f32.mrf.mxu0
        %v594 = vpop.f32.mrf.mxu0
        %v595 = vadd.f32 %v530, %v594
        %v596 = vpop.f32.mrf.mxu0
        %597 = vdwg.mxu0
        %vm598 = vcmp.ge.f32.partialorder %v584, 0.0
        %vm599 = vcmp.ge.f32.partialorder %v587, 0.0
        %vm600 = vcmp.ge.f32.partialorder %v592, 0.0
        %vm601 = vcmp.ge.f32.partialorder %v595, 0.0
        %v602 = vmul.f32 %v584, 0.2
        %v603 = vmul.f32 %v587, 0.2
        %v604 = vmul.f32 %v592, 0.2
        %v605 = vmul.f32 %v595, 0.2
        %v606 = vsel %vm598, %v584, %v602
        %v607 = vsel %vm599, %v587, %v603
        %v608 = vsel %vm600, %v592, %v604
        %v609 = vsel %vm601, %v595, %v605
        %v610 = vpack.c.bf16 %v607, %v606
        %v611 = vpack.c.bf16 %v609, %v608
        %v612 = vld [vmem:[%s4] sm:$0xf]
        %v613 = vld [vmem:[%s4 + $0x4] sm:$0xf]
        %v614 = vld [vmem:[%s4 + $0x8] sm:$0xf]
        %v615 = vld [vmem:[%s4 + $0xc] sm:$0xf]
        %v620 = vunpack.c.l.b16 %v612
        %v621 = vunpack.c.l.b16 %v613
        %v622 = vunpack.c.l.b16 %v614
        %v623 = vunpack.c.l.b16 %v615
        %v624 = vpack.c.b16 %v621, %v620
        %v625 = vpack.c.b16 %v623, %v622
        %v629 = vsel %vm542, %v610, 0
        %v632 = vsel %vm542, %v611, 0
        %634 = vmatprep.subr.bf16.mxu0 0
        %635 = vmatpush1.bf16.msra.mxu0 0
        %636 = vmatprep.subr.bf16.mxu0 0
        %637 = vmatpush1.bf16.msra.mxu0 0
        %638 = vmatprep.subr.bf16.mxu0 0
        %639 = vmatpush1.bf16.msra.mxu0 0
        %640 = vmatprep.subr.bf16.mxu0 0
        %641 = vmatpush1.bf16.msra.mxu0 0
        %642 = vmatprep.subr.bf16.mxu0 0
        %643 = vmatpush1.bf16.msra.mxu0 0
        %644 = vmatprep.subr.bf16.mxu0 0
        %645 = vmatpush1.bf16.msra.mxu0 0
        %646 = vmatprep.subr.bf16.mxu0 0
        %647 = vmatpush1.bf16.msra.mxu0 %v625
        %648 = vmatprep.subr.bf16.mxu0 0
        %649 = vmatpush1.bf16.msra.mxu0 %v624
        %650 = vmatprep.subr.bf16.mxu0 0
        %651 = vmatpush2.bf16.msra.mxu0 0
        %652 = vmatprep.subr.bf16.mxu0 0
        %653 = vmatpush2.bf16.msra.mxu0 0
        %654 = vmatprep.subr.bf16.mxu0 0
        %655 = vmatpush2.bf16.msra.mxu0 0
        %656 = vmatprep.subr.bf16.mxu0 0
        %657 = vmatpush2.bf16.msra.mxu0 0
        %658 = vmatprep.subr.bf16.mxu0 0
        %659 = vmatpush2.bf16.msra.mxu0 0
        %660 = vmatprep.subr.bf16.mxu0 0
        %661 = vmatpush2.bf16.msra.mxu0 0
        %662 = vmatprep.subr.bf16.mxu0 0
        %663 = vmatpush2.bf16.msra.mxu0 0
        %664 = vmatprep.subr.bf16.mxu0 0
        %665 = vmatpush2.bf16.msra.mxu0 0
        %666 = vmatprep.mubr.bf16.mxu0 0
        %667 = vmatmul.mubr.bf16.gmra.mxu0 %v629
        %v668 = vpop.f32.mrf.mxu0
        %v669 = vadd.f32 0.0, %v668
        %v670 = vpop.f32.mrf.mxu0
        %v671 = vpop.f32.mrf.mxu0
        %v672 = vadd.f32 0.0, %v671
        %v673 = vpop.f32.mrf.mxu0
        %674 = vmatprep.mubr.bf16.mxu0 0
        %675 = vmatmul.mubr.bf16.gmra.mxu0 %v632
        %v676 = vpop.f32.mrf.mxu0
        %v677 = vadd.f32 0.0, %v676
        %v678 = vpop.f32.mrf.mxu0
        %v679 = vpop.f32.mrf.mxu0
        %v680 = vadd.f32 0.0, %v679
        %v681 = vpop.f32.mrf.mxu0
        %682 = vdwg.mxu0
        %v683 = vpack.c.bf16 %v672, %v669
        %v684 = vpack.c.bf16 %v680, %v677
        %v685 = vld [vmem:[#allocation5] sm:$0x1]
        %v687 = vlaneseq
        %v688 = vshrl.u32 %v687, 7
        %v689 = vsub.s32 0, %v688
        %v690 = vrot.slane %v685, %v689
        %692 = vmatprep.subr.bf16.mxu0 0
        %693 = vmatpush1.bf16.msra.mxu0 0
        %694 = vmatprep.subr.bf16.mxu0 0
        %695 = vmatpush1.bf16.msra.mxu0 0
        %696 = vmatprep.subr.bf16.mxu0 0
        %697 = vmatpush1.bf16.msra.mxu0 0
        %698 = vmatprep.subr.bf16.mxu0 0
        %699 = vmatpush1.bf16.msra.mxu0 0
        %700 = vmatprep.subr.bf16.mxu0 0
        %701 = vmatpush1.bf16.msra.mxu0 0
        %702 = vmatprep.subr.bf16.mxu0 0
        %703 = vmatpush1.bf16.msra.mxu0 0
        %704 = vmatprep.subr.bf16.mxu0 0
        %705 = vmatpush1.bf16.msra.mxu0 %v684
        %706 = vmatprep.subr.bf16.mxu0 0
        %707 = vmatpush1.bf16.msra.mxu0 %v683
        %708 = vmatprep.subr.bf16.mxu0 0
        %709 = vmatpush2.bf16.msra.mxu0 0
        %710 = vmatprep.subr.bf16.mxu0 0
        %711 = vmatpush2.bf16.msra.mxu0 0
        %712 = vmatprep.subr.bf16.mxu0 0
        %713 = vmatpush2.bf16.msra.mxu0 0
        %714 = vmatprep.subr.bf16.mxu0 0
        %715 = vmatpush2.bf16.msra.mxu0 0
        %716 = vmatprep.subr.bf16.mxu0 0
        %717 = vmatpush2.bf16.msra.mxu0 0
        %718 = vmatprep.subr.bf16.mxu0 0
        %719 = vmatpush2.bf16.msra.mxu0 0
        %720 = vmatprep.subr.bf16.mxu0 0
        %721 = vmatpush2.bf16.msra.mxu0 0
        %722 = vmatprep.subr.bf16.mxu0 0
        %723 = vmatpush2.bf16.msra.mxu0 0
        %724 = vmatprep.mubr.bf16.mxu0 0
        %725 = vmatmul.mubr.bf16.gmra.mxu0 %v544
        %v726 = vpop.f32.mrf.mxu0
        %v727 = vadd.f32 %v690, %v726
        %v728 = vpop.f32.mrf.mxu0
        %v729 = vpop.f32.mrf.mxu0
        %v730 = vadd.f32 %v690, %v729
        %v731 = vpop.f32.mrf.mxu0
        %732 = vmatprep.mubr.bf16.mxu0 0
        %733 = vmatmul.mubr.bf16.gmra.mxu0 %v547
        %v734 = vpop.f32.mrf.mxu0
        %v735 = vadd.f32 %v690, %v734
        %v736 = vpop.f32.mrf.mxu0
        %v737 = vpop.f32.mrf.mxu0
        %v738 = vadd.f32 %v690, %v737
        %v739 = vpop.f32.mrf.mxu0
        %740 = vdwg.mxu0
        %vm741 = vcmp.ge.f32.partialorder %v727, 0.0
        %vm742 = vcmp.ge.f32.partialorder %v730, 0.0
        %vm743 = vcmp.ge.f32.partialorder %v735, 0.0
        %vm744 = vcmp.ge.f32.partialorder %v738, 0.0
        %v745 = vmul.f32 %v727, 0.2
        %v746 = vmul.f32 %v730, 0.2
        %v747 = vmul.f32 %v735, 0.2
        %v748 = vmul.f32 %v738, 0.2
        %v749 = vsel %vm741, %v727, %v745
        %v750 = vsel %vm742, %v730, %v746
        %v751 = vsel %vm743, %v735, %v747
        %v752 = vsel %vm744, %v738, %v748
        %v753 = vpack.c.bf16 %v750, %v749
        %v754 = vpack.c.bf16 %v752, %v751
        %v755 = vld [vmem:[%s6] sm:$0xf]
        %v756 = vld [vmem:[%s6 + $0x4] sm:$0xf]
        %v757 = vld [vmem:[#allocation7] sm:$0x1]
        %v759 = vlaneseq
        %v760 = vshrl.u32 %v759, 7
        %v761 = vsub.s32 0, %v760
        %v762 = vrot.slane %v757, %v761
        %v766 = vunpack.c.l.b16 %v755
        %v767 = vunpack.c.l.b16 %v756
        %v768 = vpack.c.b16 %v767, %v766
        %vm770 = vcmask 130048
        %v772 = vsel %vm770, %v753, 0
        %v775 = vsel %vm770, %v754, 0
        %777 = vmatprep.subr.bf16.mxu0 0
        %778 = vmatpush1.bf16.msra.mxu0 0
        %779 = vmatprep.subr.bf16.mxu0 0
        %780 = vmatpush1.bf16.msra.mxu0 0
        %781 = vmatprep.subr.bf16.mxu0 0
        %782 = vmatpush1.bf16.msra.mxu0 0
        %783 = vmatprep.subr.bf16.mxu0 0
        %784 = vmatpush1.bf16.msra.mxu0 0
        %785 = vmatprep.subr.bf16.mxu0 0
        %786 = vmatpush1.bf16.msra.mxu0 0
        %787 = vmatprep.subr.bf16.mxu0 0
        %788 = vmatpush1.bf16.msra.mxu0 0
        %789 = vmatprep.subr.bf16.mxu0 0
        %790 = vmatpush1.bf16.msra.mxu0 0
        %791 = vmatprep.subr.bf16.mxu0 0
        %792 = vmatpush1.bf16.msra.mxu0 %v768
        %793 = vmatprep.subr.bf16.mxu0 0
        %794 = vmatpush2.bf16.msra.mxu0 0
        %795 = vmatprep.subr.bf16.mxu0 0
        %796 = vmatpush2.bf16.msra.mxu0 0
        %797 = vmatprep.subr.bf16.mxu0 0
        %798 = vmatpush2.bf16.msra.mxu0 0
        %799 = vmatprep.subr.bf16.mxu0 0
        %800 = vmatpush2.bf16.msra.mxu0 0
        %801 = vmatprep.subr.bf16.mxu0 0
        %802 = vmatpush2.bf16.msra.mxu0 0
        %803 = vmatprep.subr.bf16.mxu0 0
        %804 = vmatpush2.bf16.msra.mxu0 0
        %805 = vmatprep.subr.bf16.mxu0 0
        %806 = vmatpush2.bf16.msra.mxu0 0
        %807 = vmatprep.subr.bf16.mxu0 0
        %808 = vmatpush2.bf16.msra.mxu0 0
        %809 = vmatprep.mubr.bf16.mxu0 0
        %810 = vmatmul.mubr.bf16.gmra.mxu0 %v772
        %v811 = vpop.f32.mrf.mxu0
        %v812 = vadd.f32 %v762, %v811
        %v813 = vpop.f32.mrf.mxu0
        %v814 = vpop.f32.mrf.mxu0
        %v815 = vadd.f32 %v762, %v814
        %v816 = vpop.f32.mrf.mxu0
        %817 = vmatprep.mubr.bf16.mxu0 0
        %818 = vmatmul.mubr.bf16.gmra.mxu0 %v775
        %v819 = vpop.f32.mrf.mxu0
        %v820 = vadd.f32 %v762, %v819
        %v821 = vpop.f32.mrf.mxu0
        %v822 = vpop.f32.mrf.mxu0
        %v823 = vadd.f32 %v762, %v822
        %v824 = vpop.f32.mrf.mxu0
        %825 = vdwg.mxu0
        %vm826 = vcmp.ge.f32.partialorder %v812, 0.0
        %vm827 = vcmp.ge.f32.partialorder %v815, 0.0
        %vm828 = vcmp.ge.f32.partialorder %v820, 0.0
        %vm829 = vcmp.ge.f32.partialorder %v823, 0.0
        %v830 = vmul.f32 %v812, 0.2
        %v831 = vmul.f32 %v815, 0.2
        %v832 = vmul.f32 %v820, 0.2
        %v833 = vmul.f32 %v823, 0.2
        %v834 = vsel %vm826, %v812, %v830
        %v835 = vsel %vm827, %v815, %v831
        %v836 = vsel %vm828, %v820, %v832
        %v837 = vsel %vm829, %v823, %v833
        %v838 = vpack.c.bf16 %v835, %v834
        %v839 = vpack.c.bf16 %v837, %v836
        %v840 = vld [vmem:[%s8] sm:$0xf]
        %v841 = vld [vmem:[%s9] sm:$0x1]
        %v843 = vlaneseq
        %v844 = vshrl.u32 %v843, 7
        %v845 = vsub.s32 0, %v844
        %v846 = vrot.slane %v841, %v845
        %vm848 = vcmask 64512
        %v850 = vsel %vm848, %v838, 0
        %v853 = vsel %vm848, %v839, 0
        %vm855 = vcmask 1043456
        %v857 = vsel %vm855, %v840, 0
        %859 = vmatprep.subr.bf16.mxu0 0
        %860 = vmatpush1.bf16.msra.mxu0 0
        %861 = vmatprep.subr.bf16.mxu0 0
        %862 = vmatpush1.bf16.msra.mxu0 0
        %863 = vmatprep.subr.bf16.mxu0 0
        %864 = vmatpush1.bf16.msra.mxu0 0
        %865 = vmatprep.subr.bf16.mxu0 0
        %866 = vmatpush1.bf16.msra.mxu0 0
        %867 = vmatprep.subr.bf16.mxu0 0
        %868 = vmatpush1.bf16.msra.mxu0 0
        %869 = vmatprep.subr.bf16.mxu0 0
        %870 = vmatpush1.bf16.msra.mxu0 0
        %871 = vmatprep.subr.bf16.mxu0 0
        %872 = vmatpush1.bf16.msra.mxu0 0
        %873 = vmatprep.subr.bf16.mxu0 0
        %874 = vmatpush1.bf16.msra.mxu0 %v857
        %875 = vmatprep.subr.bf16.mxu0 0
        %876 = vmatpush2.bf16.msra.mxu0 0
        %877 = vmatprep.subr.bf16.mxu0 0
        %878 = vmatpush2.bf16.msra.mxu0 0
        %879 = vmatprep.subr.bf16.mxu0 0
        %880 = vmatpush2.bf16.msra.mxu0 0
        %881 = vmatprep.subr.bf16.mxu0 0
        %882 = vmatpush2.bf16.msra.mxu0 0
        %883 = vmatprep.subr.bf16.mxu0 0
        %884 = vmatpush2.bf16.msra.mxu0 0
        %885 = vmatprep.subr.bf16.mxu0 0
        %886 = vmatpush2.bf16.msra.mxu0 0
        %887 = vmatprep.subr.bf16.mxu0 0
        %888 = vmatpush2.bf16.msra.mxu0 0
        %889 = vmatprep.subr.bf16.mxu0 0
        %890 = vmatpush2.bf16.msra.mxu0 0
        %891 = vmatprep.mubr.bf16.mxu0 0
        %892 = vmatmul.mubr.bf16.gmra.mxu0 %v850
        %v893 = vpop.f32.mrf.mxu0
        %v894 = vadd.f32 %v846, %v893
        %v895 = vpop.f32.mrf.mxu0
        %v896 = vpop.f32.mrf.mxu0
        %v897 = vadd.f32 %v846, %v896
        %v898 = vpop.f32.mrf.mxu0
        %899 = vmatprep.mubr.bf16.mxu0 0
        %900 = vmatmul.mubr.bf16.gmra.mxu0 %v853
        %v901 = vpop.f32.mrf.mxu0
        %v902 = vadd.f32 %v846, %v901
        %v903 = vpop.f32.mrf.mxu0
        %v904 = vpop.f32.mrf.mxu0
        %v905 = vadd.f32 %v846, %v904
        %v906 = vpop.f32.mrf.mxu0
        %907 = vdwg.mxu0
        %908 = vst [vmem:[%s405] sm:$0xff] %v894
        %909 = vst [vmem:[%s405 + $0x8] sm:$0xff] %v897
        %910 = vst [vmem:[%s405 + $0x10] sm:$0xff] %v902
        %911 = vst [vmem:[%s405 + $0x18] sm:$0xff] %v905
        %s912 = sand.u32 %s254, 1
        %s913 = scalar_lea.sflag [#allocation4], %s912
        %s914 = sand.u32 %s254, 1
        %s915 = smul.addr %s914, 32
        %s916 = scalar_lea.vmem [#allocation8], %s915
        // Predicated region
        $region73: #{tpu_custom_call.1} parent=59 // pred_check
          %p917 = pneg %p264
        $region74: #{tpu_custom_call.1} parent=59 // pred_check_branch
          %919 = sbr.rel (%p917) target = $region76
        $region75: #{tpu_custom_call.1} parent=59 // pred_region
          %s921 = ssub.s32 512, 512
          %922 = vsyncadd %s913, %s921
          %s923 = smul.addr %s26, 4
          %s924 = smul.addr %s923, 128
          %s925 = scalar_lea.hbm %s10, %s924
          %s926 = sshll.u32 %s916, 4
          %s927 = int_to_ptr.vmem [resolvable:$true] %s926
          %932 = dma.vmem_to_hbm [thread:$0]  %s927, 512, %s925, %s913, 128, 128, 8
        $region76: #{tpu_custom_call.1} parent=59 // pred_fallthru
          _
      $region60: #{tpu_custom_call.1} parent=5 // pred_fallthru
        _
      %p933 = scmp.le.s32.totalorder 2, %s21
      // Predicated region
      $region77: #{tpu_custom_call.1} parent=5 // pred_check
        %p934 = pneg %p933
      $region78: #{tpu_custom_call.1} parent=5 // pred_check_branch
        %936 = sbr.rel (%p934) target = $region80
      $region79: #{tpu_custom_call.1} parent=5 // pred_region
        %s937 = ssub.s32 %s21, 2
        // Predicated region
        $region81: #{tpu_custom_call.1} parent=79 // pred_check
          %p938 = pneg %p270
        $region82: #{tpu_custom_call.1} parent=79 // pred_check_branch
          %940 = sbr.rel (%p938) target = $region84
        $region83: #{tpu_custom_call.1} parent=79 // pred_region
          %s941 = sand.u32 %s255, 1
          %s942 = scalar_lea.sflag [#allocation4], %s941
          %s943 = sand.u32 %s255, 1
          %s944 = smul.addr %s943, 32
          %s945 = scalar_lea.vmem [#allocation8], %s944
          %946 = dma.done %s942, 512
        $region84: #{tpu_custom_call.1} parent=79 // pred_fallthru
          _
      $region80: #{tpu_custom_call.1} parent=5 // pred_fallthru
        _
    $region6: #{tpu_custom_call.1} parent=1 // loop_footer
      %s25 = sadd.s32 1, %s21
    $region7: #{tpu_custom_call.1} parent=1 // loop_footer_branch
      %20 = sbr.rel target = $region3
    $region8: #{tpu_custom_call.1} parent=1 // loop_exit
      _
    %947 = vsyncpa [#allocation3], 1
    %s948 = scalar_lea.sflag [#allocation3], 1
    %949 = vsyncpa %s948, 1
    %950 = vsyncpa [#allocation6], 1
    %951 = vsyncpa [#allocation4], 1
    %s952 = scalar_lea.sflag [#allocation4], 1
    %953 = vsyncpa %s952, 1

</llo_original>
